<compile_context>
chip_gen: v7x
topology: tpu7x:2x2x1
jax: 0.10.0
libtpu: 0.0.40
codegen_flags: <defaults>
</compile_context>

<pallas_src>
import functools

import jax
import jax.numpy as jnp
from jax.experimental import pallas as pl
from jax.experimental.pallas import tpu as pltpu

_SQRT_2_OVER_PI = 0.7978845608028654
_GELU_C = 0.044715


def _gelu_tanh(v):
    # v*0.5 * (tanh((v + 0.044715*v^3) * sqrt(2/pi)) + 1)   (all f32 on the VPU/EUP)
    v3 = v * v * v
    inner = (v + v3 * _GELU_C) * _SQRT_2_OVER_PI
    return (v * 0.5) * (jnp.tanh(inner) + 1.0)


def _mlp_kernel(x_ref, w1_ref, b1_ref, w2_ref, b2_ref,
                w3_ref, b3_ref, w4_ref, b4_ref, o_ref, *, use_bf16):
    def layer(h, w_ref, b_ref):
        w = w_ref[...]
        if use_bf16:
            # MXU is bf16-native on v5e/v6e/v7x; keep accumulation, bias add
            # and GELU in f32 (v5e has no bf16 VPU/EUP path).
            h = h.astype(jnp.bfloat16)
            w = w.astype(jnp.bfloat16)
        y = jnp.dot(h, w, preferred_element_type=jnp.float32) + b_ref[...]
        return _gelu_tanh(y)

    h = x_ref[...].astype(jnp.float32)
    h = layer(h, w1_ref, b1_ref)
    h = layer(h, w2_ref, b2_ref)
    h = layer(h, w3_ref, b3_ref)
    h = layer(h, w4_ref, b4_ref)
    o_ref[...] = h.astype(o_ref.dtype)


def mlp_forward(x, params, *, block_m=256, use_bf16=False):
    """x: (M, 64) f32. params: 4x (W (in,out), b (1,out)). Returns (M, 16) f32."""
    (w1, b1), (w2, b2), (w3, b3), (w4, b4) = params
    M, K = x.shape
    N_out = w4.shape[1]

    # Batch tiling: block_m rows per grid step (full batch if smaller). Pad the
    # batch up to a multiple of the tile so the grid covers it exactly.
    bm = min(block_m, M)
    pad = (-M) % bm
    if pad:
        x = jnp.pad(x, ((0, pad), (0, 0)))
    Mp = M + pad
    grid = (Mp // bm,)

    # Weights/biases: whole-array blocks with a constant block index ->
    # VMEM-resident for the entire grid (loaded once, reused every step).
    def resident(arr):
        return pl.BlockSpec(arr.shape, lambda i: (0,) * arr.ndim)

    x_spec = pl.BlockSpec((bm, K), lambda i: (i, 0))
    o_spec = pl.BlockSpec((bm, N_out), lambda i: (i, 0))

    # Advisory cost so XLA does not pessimistically schedule around the call.
    hidden = w1.shape[1]
    flops = 2 * Mp * (K * hidden + hidden * hidden * 2 + hidden * N_out)
    transcendentals = Mp * (hidden * 3 + N_out)          # one tanh per activation
    bytes_accessed = (x.size + w1.size + b1.size + w2.size + b2.size +
                      w3.size + b3.size + w4.size + b4.size + Mp * N_out) * 4

    out = pl.pallas_call(
        functools.partial(_mlp_kernel, use_bf16=use_bf16),
        out_shape=jax.ShapeDtypeStruct((Mp, N_out), jnp.float32),
        grid=grid,
        in_specs=[
            x_spec,
            resident(w1), resident(b1),
            resident(w2), resident(b2),
            resident(w3), resident(b3),
            resident(w4), resident(b4),
        ],
        out_specs=o_spec,
        compiler_params=pltpu.CompilerParams(
            dimension_semantics=("parallel",)),
        cost_estimate=pl.CostEstimate(
            flops=flops,
            transcendentals=transcendentals,
            bytes_accessed=bytes_accessed),
    )(x, w1, b1, w2, b2, w3, b3, w4, b4)

    return out[:M] if pad else out


def init_params(key):
    # torch.nn.Linear(in, out): weight (out, in), bias (out,), U(-1/sqrt(in), 1/sqrt(in)).
    # Stored transposed to (in, out); bias as (1, out) for 2-D VMEM layout.
    dims = [(64, 64), (64, 64), (64, 64), (64, 16)]
    params = []
    for (fan_in, fan_out) in dims:
        key, kw, kb = jax.random.split(key, 3)
        bound = 1.0 / (fan_in ** 0.5)
        w = jax.random.uniform(kw, (fan_in, fan_out), jnp.float32, -bound, bound)
        b = jax.random.uniform(kb, (1, fan_out), jnp.float32, -bound, bound)
        params.append((w, b))
    return params


def reference_forward(x, params):
    h = x
    for (w, b) in params:
        v = h @ w + b
        h = (v * 0.5) * (jnp.tanh((v + (v * v * v) * _GELU_C)
                                  * _SQRT_2_OVER_PI) + 1.0)
    return h


if __name__ == "__main__":
    key = jax.random.PRNGKey(0)
    key, kx = jax.random.split(key)
    x = jax.random.normal(kx, (16, 64), jnp.float32)
    params = init_params(key)

    ref = reference_forward(x, params)

    # f32 MXU path: bit-faithful to the fp32 reference.
    out = jax.block_until_ready(mlp_forward(x, params, use_bf16=False))
    assert out.shape == (16, 16), out.shape
    assert jnp.allclose(out, ref, atol=1e-5, rtol=1e-5), \
        float(jnp.max(jnp.abs(out - ref)))

    # bf16 MXU-operand path (the fast path when batch is scaled up); looser tol.
    out_bf16 = jax.block_until_ready(mlp_forward(x, params, use_bf16=True))
    assert jnp.allclose(out_bf16, ref, atol=3e-2, rtol=3e-2), \
        float(jnp.max(jnp.abs(out_bf16 - ref)))

    print("KERNEL_OK")
</pallas_src>

<mosaic_0001>
module attributes {stable_mosaic.version = 11 : i64} {
  func.func @_mlp_kernel(%arg0: i32, %arg1: memref<16x64xf32, #tpu.memory_space<vmem>>, %arg2: memref<64x64xf32, #tpu.memory_space<vmem>>, %arg3: memref<1x64xf32, #tpu.memory_space<vmem>>, %arg4: memref<64x64xf32, #tpu.memory_space<vmem>>, %arg5: memref<1x64xf32, #tpu.memory_space<vmem>>, %arg6: memref<64x64xf32, #tpu.memory_space<vmem>>, %arg7: memref<1x64xf32, #tpu.memory_space<vmem>>, %arg8: memref<64x16xf32, #tpu.memory_space<vmem>>, %arg9: memref<1x16xf32, #tpu.memory_space<vmem>>, %arg10: memref<16x16xf32, #tpu.memory_space<vmem>>) attributes {dimension_semantics = [#tpu.dimension_semantics<parallel>], iteration_bounds = array<i64: 1>, scalar_prefetch = 0 : i64, scratch_operands = 0 : i64, tpu.core_type = #tpu.core_type<tc>, window_params = [{transform_indices = @transform_0, window_bounds = array<i64: 16, 64>}, {pipeline_mode = #tpu.pipeline_mode<synchronous>, transform_indices = @transform_1, window_bounds = array<i64: 64, 64>}, {pipeline_mode = #tpu.pipeline_mode<synchronous>, transform_indices = @transform_2, window_bounds = array<i64: 1, 64>}, {pipeline_mode = #tpu.pipeline_mode<synchronous>, transform_indices = @transform_3, window_bounds = array<i64: 64, 64>}, {pipeline_mode = #tpu.pipeline_mode<synchronous>, transform_indices = @transform_4, window_bounds = array<i64: 1, 64>}, {pipeline_mode = #tpu.pipeline_mode<synchronous>, transform_indices = @transform_5, window_bounds = array<i64: 64, 64>}, {pipeline_mode = #tpu.pipeline_mode<synchronous>, transform_indices = @transform_6, window_bounds = array<i64: 1, 64>}, {pipeline_mode = #tpu.pipeline_mode<synchronous>, transform_indices = @transform_7, window_bounds = array<i64: 64, 16>}, {pipeline_mode = #tpu.pipeline_mode<synchronous>, transform_indices = @transform_8, window_bounds = array<i64: 1, 16>}, {transform_indices = @transform_9, window_bounds = array<i64: 16, 16>}]} {
    %c0 = arith.constant 0 : index
    %c0_0 = arith.constant 0 : index
    %0 = vector.load %arg1[%c0, %c0_0] : memref<16x64xf32, #tpu.memory_space<vmem>>, vector<16x64xf32>
    %c0_1 = arith.constant 0 : index
    %c0_2 = arith.constant 0 : index
    %1 = vector.load %arg2[%c0_1, %c0_2] : memref<64x64xf32, #tpu.memory_space<vmem>>, vector<64x64xf32>
    %cst = arith.constant dense<0.000000e+00> : vector<16x64xf32>
    %2 = tpu.matmul %0, %1, %cst {dimension_numbers = #tpu.dot_dimension_numbers<[1], [0], [0], [1], [0, 0, 1, 1], [], []>} : vector<16x64xf32>, vector<64x64xf32>, vector<16x64xf32> -> vector<16x64xf32>
    %c0_3 = arith.constant 0 : index
    %c0_4 = arith.constant 0 : index
    %3 = vector.load %arg3[%c0_3, %c0_4] : memref<1x64xf32, #tpu.memory_space<vmem>>, vector<1x64xf32>
    %4 = vector.broadcast %3 : vector<1x64xf32> to vector<16x64xf32>
    %5 = arith.addf %2, %4 : vector<16x64xf32>
    %6 = arith.mulf %5, %5 : vector<16x64xf32>
    %7 = arith.mulf %6, %5 : vector<16x64xf32>
    %cst_5 = arith.constant 4.471500e-02 : f32
    %8 = vector.broadcast %cst_5 : f32 to vector<16x64xf32>
    %9 = arith.mulf %7, %8 : vector<16x64xf32>
    %10 = arith.addf %5, %9 : vector<16x64xf32>
    %cst_6 = arith.constant 0.797884583 : f32
    %11 = vector.broadcast %cst_6 : f32 to vector<16x64xf32>
    %12 = arith.mulf %10, %11 : vector<16x64xf32>
    %cst_7 = arith.constant 5.000000e-01 : f32
    %13 = vector.broadcast %cst_7 : f32 to vector<16x64xf32>
    %14 = arith.mulf %5, %13 : vector<16x64xf32>
    %15 = math.tanh %12 : vector<16x64xf32>
    %cst_8 = arith.constant 1.000000e+00 : f32
    %16 = vector.broadcast %cst_8 : f32 to vector<16x64xf32>
    %17 = arith.addf %15, %16 : vector<16x64xf32>
    %18 = arith.mulf %14, %17 : vector<16x64xf32>
    %c0_9 = arith.constant 0 : index
    %c0_10 = arith.constant 0 : index
    %19 = vector.load %arg4[%c0_9, %c0_10] : memref<64x64xf32, #tpu.memory_space<vmem>>, vector<64x64xf32>
    %cst_11 = arith.constant dense<0.000000e+00> : vector<16x64xf32>
    %20 = tpu.matmul %18, %19, %cst_11 {dimension_numbers = #tpu.dot_dimension_numbers<[1], [0], [0], [1], [0, 0, 1, 1], [], []>} : vector<16x64xf32>, vector<64x64xf32>, vector<16x64xf32> -> vector<16x64xf32>
    %c0_12 = arith.constant 0 : index
    %c0_13 = arith.constant 0 : index
    %21 = vector.load %arg5[%c0_12, %c0_13] : memref<1x64xf32, #tpu.memory_space<vmem>>, vector<1x64xf32>
    %22 = vector.broadcast %21 : vector<1x64xf32> to vector<16x64xf32>
    %23 = arith.addf %20, %22 : vector<16x64xf32>
    %24 = arith.mulf %23, %23 : vector<16x64xf32>
    %25 = arith.mulf %24, %23 : vector<16x64xf32>
    %cst_14 = arith.constant 4.471500e-02 : f32
    %26 = vector.broadcast %cst_14 : f32 to vector<16x64xf32>
    %27 = arith.mulf %25, %26 : vector<16x64xf32>
    %28 = arith.addf %23, %27 : vector<16x64xf32>
    %cst_15 = arith.constant 0.797884583 : f32
    %29 = vector.broadcast %cst_15 : f32 to vector<16x64xf32>
    %30 = arith.mulf %28, %29 : vector<16x64xf32>
    %cst_16 = arith.constant 5.000000e-01 : f32
    %31 = vector.broadcast %cst_16 : f32 to vector<16x64xf32>
    %32 = arith.mulf %23, %31 : vector<16x64xf32>
    %33 = math.tanh %30 : vector<16x64xf32>
    %cst_17 = arith.constant 1.000000e+00 : f32
    %34 = vector.broadcast %cst_17 : f32 to vector<16x64xf32>
    %35 = arith.addf %33, %34 : vector<16x64xf32>
    %36 = arith.mulf %32, %35 : vector<16x64xf32>
    %c0_18 = arith.constant 0 : index
    %c0_19 = arith.constant 0 : index
    %37 = vector.load %arg6[%c0_18, %c0_19] : memref<64x64xf32, #tpu.memory_space<vmem>>, vector<64x64xf32>
    %cst_20 = arith.constant dense<0.000000e+00> : vector<16x64xf32>
    %38 = tpu.matmul %36, %37, %cst_20 {dimension_numbers = #tpu.dot_dimension_numbers<[1], [0], [0], [1], [0, 0, 1, 1], [], []>} : vector<16x64xf32>, vector<64x64xf32>, vector<16x64xf32> -> vector<16x64xf32>
    %c0_21 = arith.constant 0 : index
    %c0_22 = arith.constant 0 : index
    %39 = vector.load %arg7[%c0_21, %c0_22] : memref<1x64xf32, #tpu.memory_space<vmem>>, vector<1x64xf32>
    %40 = vector.broadcast %39 : vector<1x64xf32> to vector<16x64xf32>
    %41 = arith.addf %38, %40 : vector<16x64xf32>
    %42 = arith.mulf %41, %41 : vector<16x64xf32>
    %43 = arith.mulf %42, %41 : vector<16x64xf32>
    %cst_23 = arith.constant 4.471500e-02 : f32
    %44 = vector.broadcast %cst_23 : f32 to vector<16x64xf32>
    %45 = arith.mulf %43, %44 : vector<16x64xf32>
    %46 = arith.addf %41, %45 : vector<16x64xf32>
    %cst_24 = arith.constant 0.797884583 : f32
    %47 = vector.broadcast %cst_24 : f32 to vector<16x64xf32>
    %48 = arith.mulf %46, %47 : vector<16x64xf32>
    %cst_25 = arith.constant 5.000000e-01 : f32
    %49 = vector.broadcast %cst_25 : f32 to vector<16x64xf32>
    %50 = arith.mulf %41, %49 : vector<16x64xf32>
    %51 = math.tanh %48 : vector<16x64xf32>
    %cst_26 = arith.constant 1.000000e+00 : f32
    %52 = vector.broadcast %cst_26 : f32 to vector<16x64xf32>
    %53 = arith.addf %51, %52 : vector<16x64xf32>
    %54 = arith.mulf %50, %53 : vector<16x64xf32>
    %c0_27 = arith.constant 0 : index
    %c0_28 = arith.constant 0 : index
    %55 = vector.load %arg8[%c0_27, %c0_28] : memref<64x16xf32, #tpu.memory_space<vmem>>, vector<64x16xf32>
    %cst_29 = arith.constant dense<0.000000e+00> : vector<16x16xf32>
    %56 = tpu.matmul %54, %55, %cst_29 {dimension_numbers = #tpu.dot_dimension_numbers<[1], [0], [0], [1], [0, 0, 1, 1], [], []>} : vector<16x64xf32>, vector<64x16xf32>, vector<16x16xf32> -> vector<16x16xf32>
    %c0_30 = arith.constant 0 : index
    %c0_31 = arith.constant 0 : index
    %57 = vector.load %arg9[%c0_30, %c0_31] : memref<1x16xf32, #tpu.memory_space<vmem>>, vector<1x16xf32>
    %58 = vector.broadcast %57 : vector<1x16xf32> to vector<16x16xf32>
    %59 = arith.addf %56, %58 : vector<16x16xf32>
    %60 = arith.mulf %59, %59 : vector<16x16xf32>
    %61 = arith.mulf %60, %59 : vector<16x16xf32>
    %cst_32 = arith.constant 4.471500e-02 : f32
    %62 = vector.broadcast %cst_32 : f32 to vector<16x16xf32>
    %63 = arith.mulf %61, %62 : vector<16x16xf32>
    %64 = arith.addf %59, %63 : vector<16x16xf32>
    %cst_33 = arith.constant 0.797884583 : f32
    %65 = vector.broadcast %cst_33 : f32 to vector<16x16xf32>
    %66 = arith.mulf %64, %65 : vector<16x16xf32>
    %cst_34 = arith.constant 5.000000e-01 : f32
    %67 = vector.broadcast %cst_34 : f32 to vector<16x16xf32>
    %68 = arith.mulf %59, %67 : vector<16x16xf32>
    %69 = math.tanh %66 : vector<16x16xf32>
    %cst_35 = arith.constant 1.000000e+00 : f32
    %70 = vector.broadcast %cst_35 : f32 to vector<16x16xf32>
    %71 = arith.addf %69, %70 : vector<16x16xf32>
    %72 = arith.mulf %68, %71 : vector<16x16xf32>
    %c0_36 = arith.constant 0 : index
    %c0_37 = arith.constant 0 : index
    %73 = vector.load %arg10[%c0_36, %c0_37] : memref<16x16xf32, #tpu.memory_space<vmem>>, vector<16x16xf32>
    tpu.vector_store %arg10[%c0_36, %c0_37], %72 {strides = array<i32>} : memref<16x16xf32, #tpu.memory_space<vmem>>, vector<16x16xf32>,
    return
  }
  func.func @transform_0(%arg0: i32) -> (i32, i32) {
    %c0_i32 = arith.constant 0 : i32
    %c0_i32_0 = arith.constant 0 : i32
    return %arg0, %c0_i32 : i32, i32
  }
  func.func @transform_1(%arg0: i32) -> (i32, i32) {
    %c0_i32 = arith.constant 0 : i32
    %c0_i32_0 = arith.constant 0 : i32
    %c0_i32_1 = arith.constant 0 : i32
    return %c0_i32, %c0_i32_0 : i32, i32
  }
  func.func @transform_2(%arg0: i32) -> (i32, i32) {
    %c0_i32 = arith.constant 0 : i32
    %c0_i32_0 = arith.constant 0 : i32
    %c0_i32_1 = arith.constant 0 : i32
    return %c0_i32, %c0_i32_0 : i32, i32
  }
  func.func @transform_3(%arg0: i32) -> (i32, i32) {
    %c0_i32 = arith.constant 0 : i32
    %c0_i32_0 = arith.constant 0 : i32
    %c0_i32_1 = arith.constant 0 : i32
    return %c0_i32, %c0_i32_0 : i32, i32
  }
  func.func @transform_4(%arg0: i32) -> (i32, i32) {
    %c0_i32 = arith.constant 0 : i32
    %c0_i32_0 = arith.constant 0 : i32
    %c0_i32_1 = arith.constant 0 : i32
    return %c0_i32, %c0_i32_0 : i32, i32
  }
  func.func @transform_5(%arg0: i32) -> (i32, i32) {
    %c0_i32 = arith.constant 0 : i32
    %c0_i32_0 = arith.constant 0 : i32
    %c0_i32_1 = arith.constant 0 : i32
    return %c0_i32, %c0_i32_0 : i32, i32
  }
  func.func @transform_6(%arg0: i32) -> (i32, i32) {
    %c0_i32 = arith.constant 0 : i32
    %c0_i32_0 = arith.constant 0 : i32
    %c0_i32_1 = arith.constant 0 : i32
    return %c0_i32, %c0_i32_0 : i32, i32
  }
  func.func @transform_7(%arg0: i32) -> (i32, i32) {
    %c0_i32 = arith.constant 0 : i32
    %c0_i32_0 = arith.constant 0 : i32
    %c0_i32_1 = arith.constant 0 : i32
    return %c0_i32, %c0_i32_0 : i32, i32
  }
  func.func @transform_8(%arg0: i32) -> (i32, i32) {
    %c0_i32 = arith.constant 0 : i32
    %c0_i32_0 = arith.constant 0 : i32
    %c0_i32_1 = arith.constant 0 : i32
    return %c0_i32, %c0_i32_0 : i32, i32
  }
  func.func @transform_9(%arg0: i32) -> (i32, i32) {
    %c0_i32 = arith.constant 0 : i32
    %c0_i32_0 = arith.constant 0 : i32
    return %arg0, %c0_i32 : i32, i32
  }
}

</mosaic_0001>

<llo_original>
// kernel: tpu_custom_call.1
$region0: #{tpu_custom_call.1}
  #allocation0 [shape = 'u32[]', space=smem, size = 0x4, offset = 0x4, fixed_abs, tag = 'smem constant byte address 0x4 - core index']
  #allocation1 [shape = 'u32[144,128]{1,0:T(1,128)}', space=vmem, size = 0x12000, scoped, tag = 'internal scratch']
  %s0 = inlined_call_operand.vmem [shape: f32[16,64], index: 0, kind: input, shape index: {}]
  %s1 = inlined_call_operand.vmem [shape: f32[64,64], index: 1, kind: input, shape index: {}]
  %s2 = inlined_call_operand.vmem [shape: f32[1,64], index: 2, kind: input, shape index: {}]
  %s3 = inlined_call_operand.hbm [shape: f32[64,64], index: 3, kind: input, shape index: {}]
  %s4 = inlined_call_operand.vmem [shape: f32[1,64], index: 4, kind: input, shape index: {}]
  %s5 = inlined_call_operand.hbm [shape: f32[64,64], index: 5, kind: input, shape index: {}]
  %s6 = inlined_call_operand.vmem [shape: f32[1,64], index: 6, kind: input, shape index: {}]
  %s7 = inlined_call_operand.vmem [shape: f32[64,16], index: 7, kind: input, shape index: {}]
  %s8 = inlined_call_operand.vmem [shape: f32[1,16], index: 8, kind: input, shape index: {}]
  %s9 = inlined_call_operand.hbm [shape: f32[16,16], index: 9, kind: output, shape index: {}]
  %s10 = sld [smem:[#allocation0]]
  $region54: #{tpu_custom_call.1} parent=0
    _
  %s12 = ssub.s32 1, %s10
  %s13 = scalar_select 0, %s12, %s10
  $region1: #{tpu_custom_call.1} parent=0
    #allocation2 [shape = 'u8[32768]{0}', space=vmem, size = 0x8000, scoped, tag = 'input window, operand 3, single buffered']
    #allocation3 [shape = 's32[1]{0}', space=sflag, size = 0x4, scoped, tag = 'scoped memory for tpu_custom_call.1']
    #allocation4 [shape = 's32[1]{0}', space=sflag, size = 0x4, scoped, tag = 'scoped memory for tpu_custom_call.1']
    #allocation5 [shape = 'u8[32768]{0}', space=vmem, size = 0x8000, scoped, tag = 'input window, operand 5, single buffered']
    #allocation6 [shape = 's32[1]{0}', space=sflag, size = 0x4, scoped, tag = 'scoped memory for tpu_custom_call.1']
    #allocation7 [shape = 'u8[8192]{0}', space=vmem, size = 0x2000, scoped, tag = 'output window, operand 0, single buffered']
    %14 = vsyncpa [#allocation3], 0
    %15 = vsyncpa [#allocation6], 0
    %16 = vsyncpa [#allocation4], 0
    // Predicated region
    $region2: #{tpu_custom_call.1} parent=1 // pred_check
      _
    $region3: #{tpu_custom_call.1} parent=1 // pred_check_branch
      %18 = sbr.rel (0) target = $region5
    $region4: #{tpu_custom_call.1} parent=1 // pred_region
      _
    $region5: #{tpu_custom_call.1} parent=1 // pred_fallthru
      _
    // Predicated region
    $region6: #{tpu_custom_call.1} parent=1 // pred_check
      _
    $region7: #{tpu_custom_call.1} parent=1 // pred_check_branch
      %20 = sbr.rel (0) target = $region9
    $region8: #{tpu_custom_call.1} parent=1 // pred_region
      _
    $region9: #{tpu_custom_call.1} parent=1 // pred_fallthru
      _
    // Predicated region
    $region10: #{tpu_custom_call.1} parent=1 // pred_check
      _
    $region11: #{tpu_custom_call.1} parent=1 // pred_check_branch
      %22 = sbr.rel (0) target = $region13
    $region12: #{tpu_custom_call.1} parent=1 // pred_region
      _
    $region13: #{tpu_custom_call.1} parent=1 // pred_fallthru
      _
    // Predicated region
    $region14: #{tpu_custom_call.1} parent=1 // pred_check
      _
    $region15: #{tpu_custom_call.1} parent=1 // pred_check_branch
      %24 = sbr.rel (0) target = $region17
    $region16: #{tpu_custom_call.1} parent=1 // pred_region
      %s26 = ssub.s32 1024, 1024
      %27 = vsyncadd [#allocation3], %s26
      %s28 = sshll.u32 [#allocation2], 4
      %s29 = int_to_ptr.vmem [resolvable:$true] %s28
      %34 = dma.hbm_to_vmem [thread:$0]  %s3, 1024, %s29, [#allocation3], 128, 128, 8
    $region17: #{tpu_custom_call.1} parent=1 // pred_fallthru
      _
    // Predicated region
    $region18: #{tpu_custom_call.1} parent=1 // pred_check
      _
    $region19: #{tpu_custom_call.1} parent=1 // pred_check_branch
      %36 = sbr.rel (0) target = $region21
    $region20: #{tpu_custom_call.1} parent=1 // pred_region
      _
    $region21: #{tpu_custom_call.1} parent=1 // pred_fallthru
      _
    // Predicated region
    $region22: #{tpu_custom_call.1} parent=1 // pred_check
      _
    $region23: #{tpu_custom_call.1} parent=1 // pred_check_branch
      %38 = sbr.rel (0) target = $region25
    $region24: #{tpu_custom_call.1} parent=1 // pred_region
      %s40 = ssub.s32 1024, 1024
      %41 = vsyncadd [#allocation6], %s40
      %s42 = sshll.u32 [#allocation5], 4
      %s43 = int_to_ptr.vmem [resolvable:$true] %s42
      %48 = dma.hbm_to_vmem [thread:$0]  %s5, 1024, %s43, [#allocation6], 128, 128, 8
    $region25: #{tpu_custom_call.1} parent=1 // pred_fallthru
      _
    // Predicated region
    $region26: #{tpu_custom_call.1} parent=1 // pred_check
      _
    $region27: #{tpu_custom_call.1} parent=1 // pred_check_branch
      %50 = sbr.rel (0) target = $region29
    $region28: #{tpu_custom_call.1} parent=1 // pred_region
      _
    $region29: #{tpu_custom_call.1} parent=1 // pred_fallthru
      _
    // Predicated region
    $region30: #{tpu_custom_call.1} parent=1 // pred_check
      _
    $region31: #{tpu_custom_call.1} parent=1 // pred_check_branch
      %52 = sbr.rel (0) target = $region33
    $region32: #{tpu_custom_call.1} parent=1 // pred_region
      _
    $region33: #{tpu_custom_call.1} parent=1 // pred_fallthru
      _
    // Predicated region
    $region34: #{tpu_custom_call.1} parent=1 // pred_check
      _
    $region35: #{tpu_custom_call.1} parent=1 // pred_check_branch
      %54 = sbr.rel (0) target = $region37
    $region36: #{tpu_custom_call.1} parent=1 // pred_region
      _
    $region37: #{tpu_custom_call.1} parent=1 // pred_fallthru
      _
    // Predicated region
    $region38: #{tpu_custom_call.1} parent=1 // pred_check
      _
    $region39: #{tpu_custom_call.1} parent=1 // pred_check_branch
      %56 = sbr.rel (0) target = $region41
    $region40: #{tpu_custom_call.1} parent=1 // pred_region
      %57 = dma.done [#allocation3], 1024
    $region41: #{tpu_custom_call.1} parent=1 // pred_fallthru
      _
    // Predicated region
    $region42: #{tpu_custom_call.1} parent=1 // pred_check
      _
    $region43: #{tpu_custom_call.1} parent=1 // pred_check_branch
      %59 = sbr.rel (0) target = $region45
    $region44: #{tpu_custom_call.1} parent=1 // pred_region
      %60 = dma.done [#allocation6], 1024
    $region45: #{tpu_custom_call.1} parent=1 // pred_fallthru
      _
    %v61 = vld [vmem:[%s0] sm:$0xff]
    %v62 = vld [vmem:[%s0 + $0x8] sm:$0xff]
    %v63 = vld [vmem:[%s1] sm:$0xff]
    %v64 = vld [vmem:[%s1 + $0x8] sm:$0xff]
    %v65 = vld [vmem:[%s1 + $0x10] sm:$0xff]
    %v66 = vld [vmem:[%s1 + $0x18] sm:$0xff]
    %v67 = vld [vmem:[%s1 + $0x20] sm:$0xff]
    %v68 = vld [vmem:[%s1 + $0x28] sm:$0xff]
    %v69 = vld [vmem:[%s1 + $0x30] sm:$0xff]
    %v70 = vld [vmem:[%s1 + $0x38] sm:$0xff]
    %v71 = vld [vmem:[%s2] sm:$0x1]
    %v73 = vlaneseq
    %v74 = vshrl.u32 %v73, 7
    %v75 = vsub.s32 0, %v74
    %v76 = vrot.slane %v71, %v75
    %vm78 = vcmask 523264
    %v80 = vsel %vm78, %v61, 0
    %v83 = vsel %vm78, %v62, 0
    %85 = vmatprep.subr.mxu0 0.0
    %86 = vmatpush1.msra.mxu0 %v63
    %87 = vmatprep.subr.mxu0 0.0
    %88 = vmatpush1.msra.mxu0 %v64
    %89 = vmatprep.subr.mxu0 0.0
    %90 = vmatpush1.msra.mxu0 %v65
    %91 = vmatprep.subr.mxu0 0.0
    %92 = vmatpush1.msra.mxu0 %v66
    %93 = vmatprep.subr.mxu0 0.0
    %94 = vmatpush1.msra.mxu0 %v67
    %95 = vmatprep.subr.mxu0 0.0
    %96 = vmatpush1.msra.mxu0 %v68
    %97 = vmatprep.subr.mxu0 0.0
    %98 = vmatpush1.msra.mxu0 %v69
    %99 = vmatprep.subr.mxu0 0.0
    %100 = vmatpush1.msra.mxu0 %v70
    %101 = vmatprep.subr.mxu0 0.0
    %102 = vmatpush1.msra.mxu0 0.0
    %103 = vmatprep.subr.mxu0 0.0
    %104 = vmatpush1.msra.mxu0 0.0
    %105 = vmatprep.subr.mxu0 0.0
    %106 = vmatpush1.msra.mxu0 0.0
    %107 = vmatprep.subr.mxu0 0.0
    %108 = vmatpush1.msra.mxu0 0.0
    %109 = vmatprep.subr.mxu0 0.0
    %110 = vmatpush1.msra.mxu0 0.0
    %111 = vmatprep.subr.mxu0 0.0
    %112 = vmatpush1.msra.mxu0 0.0
    %113 = vmatprep.subr.mxu0 0.0
    %114 = vmatpush1.msra.mxu0 0.0
    %115 = vmatprep.subr.mxu0 0.0
    %116 = vmatpush1.msra.mxu0 0.0
    %117 = vmatprep.subr.mxu0 0.0
    %118 = vmatpush1.msra.mxu0 0.0
    %119 = vmatprep.subr.mxu0 0.0
    %120 = vmatpush1.msra.mxu0 0.0
    %121 = vmatprep.subr.mxu0 0.0
    %122 = vmatpush1.msra.mxu0 0.0
    %123 = vmatprep.subr.mxu0 0.0
    %124 = vmatpush1.msra.mxu0 0.0
    %125 = vmatprep.subr.mxu0 0.0
    %126 = vmatpush1.msra.mxu0 0.0
    %127 = vmatprep.subr.mxu0 0.0
    %128 = vmatpush1.msra.mxu0 0.0
    %129 = vmatprep.subr.mxu0 0.0
    %130 = vmatpush1.msra.mxu0 0.0
    %131 = vmatprep.subr.mxu0 0.0
    %132 = vmatpush1.msra.mxu0 0.0
    %133 = vmatprep.subr.mxu0 0.0
    %134 = vmatpush1.msra.mxu0 0.0
    %135 = vmatprep.subr.mxu0 0.0
    %136 = vmatpush1.msra.mxu0 0.0
    %137 = vmatprep.subr.mxu0 0.0
    %138 = vmatpush1.msra.mxu0 0.0
    %139 = vmatprep.subr.mxu0 0.0
    %140 = vmatpush1.msra.mxu0 0.0
    %141 = vmatprep.subr.mxu0 0.0
    %142 = vmatpush1.msra.mxu0 0.0
    %143 = vmatprep.subr.mxu0 0.0
    %144 = vmatpush1.msra.mxu0 0.0
    %145 = vmatprep.subr.mxu0 0.0
    %146 = vmatpush1.msra.mxu0 0.0
    %147 = vmatprep.subr.mxu0 0.0
    %148 = vmatpush1.msra.mxu0 0.0
    %149 = vmatprep.mubr.f32.mxu0 0.0
    %150 = vmatmul.mubr.f32.gmra.mrb[0].mxu0 %v80
    %v151 = vpop.f32.mrb[0].mxu0
    %v152 = vadd.f32 %v76, %v151
    %v153 = vpop.f32.mrb[0].mxu0
    %154 = vmatprep.mubr.f32.mxu0 0.0
    %155 = vmatmul.mubr.f32.gmra.mrb[0].mxu0 %v83
    %v156 = vpop.f32.mrb[0].mxu0
    %v157 = vadd.f32 %v76, %v156
    %v158 = vpop.f32.mrb[0].mxu0
    %159 = vdwg.mxu0
    %v160 = vmul.f32 %v152, %v152
    %v161 = vmul.f32 %v157, %v157
    %v162 = vmul.f32 %v160, %v152
    %v163 = vmul.f32 %v161, %v157
    %v164 = vmul.f32 %v162, 0.044715
    %v165 = vmul.f32 %v163, 0.044715
    %v166 = vadd.f32 %v152, %v164
    %v167 = vadd.f32 %v157, %v165
    %v168 = vmul.f32 %v166, 0.7978846
    %v169 = vmul.f32 %v167, 0.7978846
    %v170 = vmul.f32 %v152, 0.5
    %v171 = vmul.f32 %v157, 0.5
    %v172 = vtanh.pop %v168
    %v173 = vtanh.pop %v169
    %v174 = vadd.f32 %v172, 1.0
    %v175 = vadd.f32 %v173, 1.0
    %v176 = vmul.f32 %v170, %v174
    %v177 = vmul.f32 %v171, %v175
    %v178 = vld [vmem:[#allocation2] sm:$0xff]
    %v179 = vld [vmem:[#allocation2 + $0x8] sm:$0xff]
    %v180 = vld [vmem:[#allocation2 + $0x10] sm:$0xff]
    %v181 = vld [vmem:[#allocation2 + $0x18] sm:$0xff]
    %v182 = vld [vmem:[#allocation2 + $0x20] sm:$0xff]
    %v183 = vld [vmem:[#allocation2 + $0x28] sm:$0xff]
    %v184 = vld [vmem:[#allocation2 + $0x30] sm:$0xff]
    %v185 = vld [vmem:[#allocation2 + $0x38] sm:$0xff]
    %v186 = vld [vmem:[%s4] sm:$0x1]
    %v188 = vlaneseq
    %v189 = vshrl.u32 %v188, 7
    %v190 = vsub.s32 0, %v189
    %v191 = vrot.slane %v186, %v190
    %v194 = vsel %vm78, %v176, 0
    %v197 = vsel %vm78, %v177, 0
    %199 = vmatprep.subr.mxu0 0.0
    %200 = vmatpush1.msra.mxu0 %v178
    %201 = vmatprep.subr.mxu0 0.0
    %202 = vmatpush1.msra.mxu0 %v179
    %203 = vmatprep.subr.mxu0 0.0
    %204 = vmatpush1.msra.mxu0 %v180
    %205 = vmatprep.subr.mxu0 0.0
    %206 = vmatpush1.msra.mxu0 %v181
    %207 = vmatprep.subr.mxu0 0.0
    %208 = vmatpush1.msra.mxu0 %v182
    %209 = vmatprep.subr.mxu0 0.0
    %210 = vmatpush1.msra.mxu0 %v183
    %211 = vmatprep.subr.mxu0 0.0
    %212 = vmatpush1.msra.mxu0 %v184
    %213 = vmatprep.subr.mxu0 0.0
    %214 = vmatpush1.msra.mxu0 %v185
    %215 = vmatprep.subr.mxu0 0.0
    %216 = vmatpush1.msra.mxu0 0.0
    %217 = vmatprep.subr.mxu0 0.0
    %218 = vmatpush1.msra.mxu0 0.0
    %219 = vmatprep.subr.mxu0 0.0
    %220 = vmatpush1.msra.mxu0 0.0
    %221 = vmatprep.subr.mxu0 0.0
    %222 = vmatpush1.msra.mxu0 0.0
    %223 = vmatprep.subr.mxu0 0.0
    %224 = vmatpush1.msra.mxu0 0.0
    %225 = vmatprep.subr.mxu0 0.0
    %226 = vmatpush1.msra.mxu0 0.0
    %227 = vmatprep.subr.mxu0 0.0
    %228 = vmatpush1.msra.mxu0 0.0
    %229 = vmatprep.subr.mxu0 0.0
    %230 = vmatpush1.msra.mxu0 0.0
    %231 = vmatprep.subr.mxu0 0.0
    %232 = vmatpush1.msra.mxu0 0.0
    %233 = vmatprep.subr.mxu0 0.0
    %234 = vmatpush1.msra.mxu0 0.0
    %235 = vmatprep.subr.mxu0 0.0
    %236 = vmatpush1.msra.mxu0 0.0
    %237 = vmatprep.subr.mxu0 0.0
    %238 = vmatpush1.msra.mxu0 0.0
    %239 = vmatprep.subr.mxu0 0.0
    %240 = vmatpush1.msra.mxu0 0.0
    %241 = vmatprep.subr.mxu0 0.0
    %242 = vmatpush1.msra.mxu0 0.0
    %243 = vmatprep.subr.mxu0 0.0
    %244 = vmatpush1.msra.mxu0 0.0
    %245 = vmatprep.subr.mxu0 0.0
    %246 = vmatpush1.msra.mxu0 0.0
    %247 = vmatprep.subr.mxu0 0.0
    %248 = vmatpush1.msra.mxu0 0.0
    %249 = vmatprep.subr.mxu0 0.0
    %250 = vmatpush1.msra.mxu0 0.0
    %251 = vmatprep.subr.mxu0 0.0
    %252 = vmatpush1.msra.mxu0 0.0
    %253 = vmatprep.subr.mxu0 0.0
    %254 = vmatpush1.msra.mxu0 0.0
    %255 = vmatprep.subr.mxu0 0.0
    %256 = vmatpush1.msra.mxu0 0.0
    %257 = vmatprep.subr.mxu0 0.0
    %258 = vmatpush1.msra.mxu0 0.0
    %259 = vmatprep.subr.mxu0 0.0
    %260 = vmatpush1.msra.mxu0 0.0
    %261 = vmatprep.subr.mxu0 0.0
    %262 = vmatpush1.msra.mxu0 0.0
    %263 = vmatprep.mubr.f32.mxu0 0.0
    %264 = vmatmul.mubr.f32.gmra.mrb[0].mxu0 %v194
    %v265 = vpop.f32.mrb[0].mxu0
    %v266 = vadd.f32 %v191, %v265
    %v267 = vpop.f32.mrb[0].mxu0
    %268 = vmatprep.mubr.f32.mxu0 0.0
    %269 = vmatmul.mubr.f32.gmra.mrb[0].mxu0 %v197
    %v270 = vpop.f32.mrb[0].mxu0
    %v271 = vadd.f32 %v191, %v270
    %v272 = vpop.f32.mrb[0].mxu0
    %273 = vdwg.mxu0
    %v274 = vmul.f32 %v266, %v266
    %v275 = vmul.f32 %v271, %v271
    %v276 = vmul.f32 %v274, %v266
    %v277 = vmul.f32 %v275, %v271
    %v278 = vmul.f32 %v276, 0.044715
    %v279 = vmul.f32 %v277, 0.044715
    %v280 = vadd.f32 %v266, %v278
    %v281 = vadd.f32 %v271, %v279
    %v282 = vmul.f32 %v280, 0.7978846
    %v283 = vmul.f32 %v281, 0.7978846
    %v284 = vmul.f32 %v266, 0.5
    %v285 = vmul.f32 %v271, 0.5
    %v286 = vtanh.pop %v282
    %v287 = vtanh.pop %v283
    %v288 = vadd.f32 %v286, 1.0
    %v289 = vadd.f32 %v287, 1.0
    %v290 = vmul.f32 %v284, %v288
    %v291 = vmul.f32 %v285, %v289
    %v292 = vld [vmem:[#allocation5] sm:$0xff]
    %v293 = vld [vmem:[#allocation5 + $0x8] sm:$0xff]
    %v294 = vld [vmem:[#allocation5 + $0x10] sm:$0xff]
    %v295 = vld [vmem:[#allocation5 + $0x18] sm:$0xff]
    %v296 = vld [vmem:[#allocation5 + $0x20] sm:$0xff]
    %v297 = vld [vmem:[#allocation5 + $0x28] sm:$0xff]
    %v298 = vld [vmem:[#allocation5 + $0x30] sm:$0xff]
    %v299 = vld [vmem:[#allocation5 + $0x38] sm:$0xff]
    %v300 = vld [vmem:[%s6] sm:$0x1]
    %v302 = vlaneseq
    %v303 = vshrl.u32 %v302, 7
    %v304 = vsub.s32 0, %v303
    %v305 = vrot.slane %v300, %v304
    %v308 = vsel %vm78, %v290, 0
    %v311 = vsel %vm78, %v291, 0
    %313 = vmatprep.subr.mxu0 0.0
    %314 = vmatpush1.msra.mxu0 %v292
    %315 = vmatprep.subr.mxu0 0.0
    %316 = vmatpush1.msra.mxu0 %v293
    %317 = vmatprep.subr.mxu0 0.0
    %318 = vmatpush1.msra.mxu0 %v294
    %319 = vmatprep.subr.mxu0 0.0
    %320 = vmatpush1.msra.mxu0 %v295
    %321 = vmatprep.subr.mxu0 0.0
    %322 = vmatpush1.msra.mxu0 %v296
    %323 = vmatprep.subr.mxu0 0.0
    %324 = vmatpush1.msra.mxu0 %v297
    %325 = vmatprep.subr.mxu0 0.0
    %326 = vmatpush1.msra.mxu0 %v298
    %327 = vmatprep.subr.mxu0 0.0
    %328 = vmatpush1.msra.mxu0 %v299
    %329 = vmatprep.subr.mxu0 0.0
    %330 = vmatpush1.msra.mxu0 0.0
    %331 = vmatprep.subr.mxu0 0.0
    %332 = vmatpush1.msra.mxu0 0.0
    %333 = vmatprep.subr.mxu0 0.0
    %334 = vmatpush1.msra.mxu0 0.0
    %335 = vmatprep.subr.mxu0 0.0
    %336 = vmatpush1.msra.mxu0 0.0
    %337 = vmatprep.subr.mxu0 0.0
    %338 = vmatpush1.msra.mxu0 0.0
    %339 = vmatprep.subr.mxu0 0.0
    %340 = vmatpush1.msra.mxu0 0.0
    %341 = vmatprep.subr.mxu0 0.0
    %342 = vmatpush1.msra.mxu0 0.0
    %343 = vmatprep.subr.mxu0 0.0
    %344 = vmatpush1.msra.mxu0 0.0
    %345 = vmatprep.subr.mxu0 0.0
    %346 = vmatpush1.msra.mxu0 0.0
    %347 = vmatprep.subr.mxu0 0.0
    %348 = vmatpush1.msra.mxu0 0.0
    %349 = vmatprep.subr.mxu0 0.0
    %350 = vmatpush1.msra.mxu0 0.0
    %351 = vmatprep.subr.mxu0 0.0
    %352 = vmatpush1.msra.mxu0 0.0
    %353 = vmatprep.subr.mxu0 0.0
    %354 = vmatpush1.msra.mxu0 0.0
    %355 = vmatprep.subr.mxu0 0.0
    %356 = vmatpush1.msra.mxu0 0.0
    %357 = vmatprep.subr.mxu0 0.0
    %358 = vmatpush1.msra.mxu0 0.0
    %359 = vmatprep.subr.mxu0 0.0
    %360 = vmatpush1.msra.mxu0 0.0
    %361 = vmatprep.subr.mxu0 0.0
    %362 = vmatpush1.msra.mxu0 0.0
    %363 = vmatprep.subr.mxu0 0.0
    %364 = vmatpush1.msra.mxu0 0.0
    %365 = vmatprep.subr.mxu0 0.0
    %366 = vmatpush1.msra.mxu0 0.0
    %367 = vmatprep.subr.mxu0 0.0
    %368 = vmatpush1.msra.mxu0 0.0
    %369 = vmatprep.subr.mxu0 0.0
    %370 = vmatpush1.msra.mxu0 0.0
    %371 = vmatprep.subr.mxu0 0.0
    %372 = vmatpush1.msra.mxu0 0.0
    %373 = vmatprep.subr.mxu0 0.0
    %374 = vmatpush1.msra.mxu0 0.0
    %375 = vmatprep.subr.mxu0 0.0
    %376 = vmatpush1.msra.mxu0 0.0
    %377 = vmatprep.mubr.f32.mxu0 0.0
    %378 = vmatmul.mubr.f32.gmra.mrb[0].mxu0 %v308
    %v379 = vpop.f32.mrb[0].mxu0
    %v380 = vadd.f32 %v305, %v379
    %v381 = vpop.f32.mrb[0].mxu0
    %382 = vmatprep.mubr.f32.mxu0 0.0
    %383 = vmatmul.mubr.f32.gmra.mrb[0].mxu0 %v311
    %v384 = vpop.f32.mrb[0].mxu0
    %v385 = vadd.f32 %v305, %v384
    %v386 = vpop.f32.mrb[0].mxu0
    %387 = vdwg.mxu0
    %v388 = vmul.f32 %v380, %v380
    %v389 = vmul.f32 %v385, %v385
    %v390 = vmul.f32 %v388, %v380
    %v391 = vmul.f32 %v389, %v385
    %v392 = vmul.f32 %v390, 0.044715
    %v393 = vmul.f32 %v391, 0.044715
    %v394 = vadd.f32 %v380, %v392
    %v395 = vadd.f32 %v385, %v393
    %v396 = vmul.f32 %v394, 0.7978846
    %v397 = vmul.f32 %v395, 0.7978846
    %v398 = vmul.f32 %v380, 0.5
    %v399 = vmul.f32 %v385, 0.5
    %v400 = vtanh.pop %v396
    %v401 = vtanh.pop %v397
    %v402 = vadd.f32 %v400, 1.0
    %v403 = vadd.f32 %v401, 1.0
    %v404 = vmul.f32 %v398, %v402
    %v405 = vmul.f32 %v399, %v403
    %v406 = vld [vmem:[%s7] sm:$0xff]
    %v407 = vld [vmem:[%s7 + $0x8] sm:$0xff]
    %v408 = vld [vmem:[%s7 + $0x10] sm:$0xff]
    %v409 = vld [vmem:[%s7 + $0x18] sm:$0xff]
    %v410 = vld [vmem:[%s7 + $0x20] sm:$0xff]
    %v411 = vld [vmem:[%s7 + $0x28] sm:$0xff]
    %v412 = vld [vmem:[%s7 + $0x30] sm:$0xff]
    %v413 = vld [vmem:[%s7 + $0x38] sm:$0xff]
    %v414 = vld [vmem:[%s8] sm:$0x1]
    %v416 = vlaneseq
    %v417 = vshrl.u32 %v416, 7
    %v418 = vsub.s32 0, %v417
    %v419 = vrot.slane %v414, %v418
    %v422 = vsel %vm78, %v404, 0
    %v425 = vsel %vm78, %v405, 0
    %427 = vmatprep.subr.mxu0 0.0
    %428 = vmatpush1.msra.mxu0 %v406
    %429 = vmatprep.subr.mxu0 0.0
    %430 = vmatpush1.msra.mxu0 %v407
    %431 = vmatprep.subr.mxu0 0.0
    %432 = vmatpush1.msra.mxu0 %v408
    %433 = vmatprep.subr.mxu0 0.0
    %434 = vmatpush1.msra.mxu0 %v409
    %435 = vmatprep.subr.mxu0 0.0
    %436 = vmatpush1.msra.mxu0 %v410
    %437 = vmatprep.subr.mxu0 0.0
    %438 = vmatpush1.msra.mxu0 %v411
    %439 = vmatprep.subr.mxu0 0.0
    %440 = vmatpush1.msra.mxu0 %v412
    %441 = vmatprep.subr.mxu0 0.0
    %442 = vmatpush1.msra.mxu0 %v413
    %443 = vmatprep.subr.mxu0 0.0
    %444 = vmatpush1.msra.mxu0 0.0
    %445 = vmatprep.subr.mxu0 0.0
    %446 = vmatpush1.msra.mxu0 0.0
    %447 = vmatprep.subr.mxu0 0.0
    %448 = vmatpush1.msra.mxu0 0.0
    %449 = vmatprep.subr.mxu0 0.0
    %450 = vmatpush1.msra.mxu0 0.0
    %451 = vmatprep.subr.mxu0 0.0
    %452 = vmatpush1.msra.mxu0 0.0
    %453 = vmatprep.subr.mxu0 0.0
    %454 = vmatpush1.msra.mxu0 0.0
    %455 = vmatprep.subr.mxu0 0.0
    %456 = vmatpush1.msra.mxu0 0.0
    %457 = vmatprep.subr.mxu0 0.0
    %458 = vmatpush1.msra.mxu0 0.0
    %459 = vmatprep.subr.mxu0 0.0
    %460 = vmatpush1.msra.mxu0 0.0
    %461 = vmatprep.subr.mxu0 0.0
    %462 = vmatpush1.msra.mxu0 0.0
    %463 = vmatprep.subr.mxu0 0.0
    %464 = vmatpush1.msra.mxu0 0.0
    %465 = vmatprep.subr.mxu0 0.0
    %466 = vmatpush1.msra.mxu0 0.0
    %467 = vmatprep.subr.mxu0 0.0
    %468 = vmatpush1.msra.mxu0 0.0
    %469 = vmatprep.subr.mxu0 0.0
    %470 = vmatpush1.msra.mxu0 0.0
    %471 = vmatprep.subr.mxu0 0.0
    %472 = vmatpush1.msra.mxu0 0.0
    %473 = vmatprep.subr.mxu0 0.0
    %474 = vmatpush1.msra.mxu0 0.0
    %475 = vmatprep.subr.mxu0 0.0
    %476 = vmatpush1.msra.mxu0 0.0
    %477 = vmatprep.subr.mxu0 0.0
    %478 = vmatpush1.msra.mxu0 0.0
    %479 = vmatprep.subr.mxu0 0.0
    %480 = vmatpush1.msra.mxu0 0.0
    %481 = vmatprep.subr.mxu0 0.0
    %482 = vmatpush1.msra.mxu0 0.0
    %483 = vmatprep.subr.mxu0 0.0
    %484 = vmatpush1.msra.mxu0 0.0
    %485 = vmatprep.subr.mxu0 0.0
    %486 = vmatpush1.msra.mxu0 0.0
    %487 = vmatprep.subr.mxu0 0.0
    %488 = vmatpush1.msra.mxu0 0.0
    %489 = vmatprep.subr.mxu0 0.0
    %490 = vmatpush1.msra.mxu0 0.0
    %491 = vmatprep.mubr.f32.mxu0 0.0
    %492 = vmatmul.mubr.f32.gmra.mrb[0].mxu0 %v422
    %v493 = vpop.f32.mrb[0].mxu0
    %v494 = vadd.f32 %v419, %v493
    %v495 = vpop.f32.mrb[0].mxu0
    %496 = vmatprep.mubr.f32.mxu0 0.0
    %497 = vmatmul.mubr.f32.gmra.mrb[0].mxu0 %v425
    %v498 = vpop.f32.mrb[0].mxu0
    %v499 = vadd.f32 %v419, %v498
    %v500 = vpop.f32.mrb[0].mxu0
    %501 = vdwg.mxu0
    %v502 = vmul.f32 %v494, %v494
    %v503 = vmul.f32 %v499, %v499
    %v504 = vmul.f32 %v502, %v494
    %v505 = vmul.f32 %v503, %v499
    %v506 = vmul.f32 %v504, 0.044715
    %v507 = vmul.f32 %v505, 0.044715
    %v508 = vadd.f32 %v494, %v506
    %v509 = vadd.f32 %v499, %v507
    %v510 = vmul.f32 %v508, 0.7978846
    %v511 = vmul.f32 %v509, 0.7978846
    %v512 = vmul.f32 %v494, 0.5
    %v513 = vmul.f32 %v499, 0.5
    %v514 = vtanh.pop %v510
    %v515 = vtanh.pop %v511
    %v516 = vadd.f32 %v514, 1.0
    %v517 = vadd.f32 %v515, 1.0
    %v518 = vmul.f32 %v512, %v516
    %v519 = vmul.f32 %v513, %v517
    %vm520 = vcmask 130048
    %521 = vst.msk [vmem:[#allocation7] sm:$0xff] %vm520, %v518
    %522 = vst.msk [vmem:[#allocation7 + $0x8] sm:$0xff] %vm520, %v519
    // Predicated region
    $region46: #{tpu_custom_call.1} parent=1 // pred_check
      _
    $region47: #{tpu_custom_call.1} parent=1 // pred_check_branch
      %524 = sbr.rel (0) target = $region49
    $region48: #{tpu_custom_call.1} parent=1 // pred_region
      %s526 = ssub.s32 256, 256
      %527 = vsyncadd [#allocation4], %s526
      %s528 = sshll.u32 [#allocation7], 4
      %s529 = int_to_ptr.vmem [resolvable:$true] %s528
      %534 = dma.vmem_to_hbm [thread:$0]  %s529, 256, %s9, [#allocation4], 128, 128, 8
    $region49: #{tpu_custom_call.1} parent=1 // pred_fallthru
      _
    // Predicated region
    $region50: #{tpu_custom_call.1} parent=1 // pred_check
      _
    $region51: #{tpu_custom_call.1} parent=1 // pred_check_branch
      %536 = sbr.rel (0) target = $region53
    $region52: #{tpu_custom_call.1} parent=1 // pred_region
      %537 = dma.done [#allocation4], 256
    $region53: #{tpu_custom_call.1} parent=1 // pred_fallthru
      _
    %538 = vsyncpa [#allocation3], 1
    %539 = vsyncpa [#allocation6], 1
    %540 = vsyncpa [#allocation4], 1

</llo_original>
